<compile_context>
chip_gen: v7x
topology: tpu7x:2x2x1
jax: 0.10.0
libtpu: 0.0.40
codegen_flags: <defaults>
</compile_context>

<pallas_src>
import functools

import jax
import jax.numpy as jnp
from jax import lax
from jax.experimental import pallas as pl
from jax.experimental.pallas import tpu as pltpu


def _head_kernel(x_ref, w_ref, b_ref, o_ref, *, n_chunks, chunk):
    # Eval-mode dropout is the identity, so the hot path is the linear projection.
    b = b_ref[0]                                           # scalar bias from SMEM
    tb = x_ref.shape[0]

    if n_chunks == 1:
        # Small H: single-pass multiply + lane reduce (VPU/XLU), f32 accumulation.
        x = x_ref[...].astype(jnp.float32)                 # [TB, H]
        w = w_ref[...].astype(jnp.float32)                 # [1,  H] VMEM-resident row
        y = jnp.sum(x * w, axis=-1, keepdims=True)         # [TB, 1] f32
    else:
        # Large H: chunk the column reduction so the f32 upcast/product
        # temporary stays small (frees VMEM for a bigger batch tile).
        def body(c, acc):
            off = pl.multiple_of(c * chunk, chunk)
            xc = x_ref[:, pl.ds(off, chunk)].astype(jnp.float32)   # [TB, chunk]
            wc = w_ref[:, pl.ds(off, chunk)].astype(jnp.float32)   # [1,  chunk]
            return acc + jnp.sum(xc * wc, axis=-1, keepdims=True)

        y = lax.fori_loop(0, n_chunks, body,
                          jnp.zeros((tb, 1), jnp.float32), unroll=True)

    o_ref[...] = (y + b).astype(o_ref.dtype)


def roberta_classification_head(features, out_proj_w, out_proj_b, *, block_b=None):
    """features:   [B, H]  (f32 or bf16; bf16 preferred — halves HBM bytes moved)
       out_proj_w: [1, H]  (PyTorch nn.Linear weight layout, no transpose needed)
       out_proj_b: [1]
       returns:    [B, 1]  float32 logits
    """
    B, H = features.shape
    in_itemsize = jnp.dtype(features.dtype).itemsize
    w_itemsize = jnp.dtype(out_proj_w.dtype).itemsize

    # Packed-sublane multiple for the input dtype (f32: 8, bf16: 16, int8/fp8: 32).
    mult = {4: 8, 2: 16, 1: 32}.get(in_itemsize, 8)

    # Column-chunking for the reduction (keeps the f32 temporary to a few vregs).
    if H > 512 and H % 512 == 0:
        chunk = 512
    elif H > 256 and H % 256 == 0:
        chunk = 256
    else:
        chunk = H
    n_chunks = max(1, H // chunk)

    # Dtype-aware default batch tile (kernel is HBM-read bound; bigger tiles
    # amortize the ~0.35 us fixed per-grid-step overhead).
    if block_b is None:
        block_b = 2048 if in_itemsize >= 4 else 4096
    tb = min(block_b, B)

    # VMEM budget: double-buffered input tile + f32 chunk temporaries + output,
    # kept under 14 MiB so it fits v5e's 16 MiB default scoped VMEM (and is far
    # below v6e's 32 MiB scoped / v7x's 64 MiB physical) without compiler flags.
    budget = 14 * 1024 * 1024
    bytes_per_row = 2 * H * in_itemsize + 8 * chunk + 16
    max_tb = max(mult, (budget // bytes_per_row) // mult * mult)
    tb = min(tb, max_tb)

    # Guarantee >= 2 grid steps when B allows it, so the "parallel" batch axis
    # actually shards across both TensorCores on v7x.
    if B > mult:
        half = pl.cdiv(B, 2)
        half = pl.cdiv(half, mult) * mult
        tb = min(tb, half)

    tb = max(mult, (tb // mult) * mult)
    grid = (pl.cdiv(B, tb),)

    # Flat 1-D bias in SMEM (2-D SMEM would pad to an [8,128]-word tile).
    bias = out_proj_b.reshape(1).astype(jnp.float32)

    cost = pl.CostEstimate(
        flops=2 * B * H,
        transcendentals=0,
        bytes_accessed=B * H * in_itemsize + H * w_itemsize + B * 4,
    )

    kernel = functools.partial(_head_kernel, n_chunks=n_chunks, chunk=chunk)

    return pl.pallas_call(
        kernel,
        out_shape=jax.ShapeDtypeStruct((B, 1), jnp.float32),
        grid=grid,
        in_specs=[
            # features: batch-tiled, software-pipelined (DMA of tile i+1 overlaps compute of i)
            pl.BlockSpec((tb, H), lambda i: (i, 0)),
            # weight row: same block every step -> stays resident in VMEM
            pl.BlockSpec((1, H), lambda i: (0, 0)),
            # bias: single scalar on the scalar path
            pl.BlockSpec(memory_space=pltpu.MemorySpace.SMEM),
        ],
        out_specs=pl.BlockSpec((tb, 1), lambda i: (i, 0)),
        compiler_params=pltpu.CompilerParams(
            dimension_semantics=("parallel",),
        ),
        cost_estimate=cost,
    )(features, out_proj_w, bias)


if __name__ == "__main__":
    key = jax.random.PRNGKey(0)
    k_feat, k_w, k_b, k_feat2, k_feat3, k_w3 = jax.random.split(key, 6)

    # --- Test 1: small single-tile case (batch=8, hidden=32), f32, strict check ---
    B, H = 8, 32
    features = jax.random.normal(k_feat, (B, H), dtype=jnp.float32)
    out_proj_w = jax.random.normal(k_w, (1, H), dtype=jnp.float32) * 0.02
    out_proj_b = jax.random.normal(k_b, (1,), dtype=jnp.float32) * 0.02

    out = roberta_classification_head(features, out_proj_w, out_proj_b)
    out = jax.block_until_ready(out)
    ref = features @ out_proj_w.T + out_proj_b
    assert out.shape == (B, 1)
    assert jnp.allclose(out, ref, atol=1e-5, rtol=1e-5)

    # --- Test 2: multi-tile batch (exercises the pipelined grid), f32 ---
    B2 = 64
    features2 = jax.random.normal(k_feat2, (B2, H), dtype=jnp.float32)
    out2 = roberta_classification_head(features2, out_proj_w, out_proj_b, block_b=16)
    out2 = jax.block_until_ready(out2)
    ref2 = features2 @ out_proj_w.T + out_proj_b
    assert out2.shape == (B2, 1)
    assert jnp.allclose(out2, ref2, atol=1e-5, rtol=1e-5)

    # --- Test 3: bf16 inputs (half the HBM bytes), f32 accumulation inside kernel ---
    f_bf16 = features2.astype(jnp.bfloat16)
    w_bf16 = out_proj_w.astype(jnp.bfloat16)
    out3 = roberta_classification_head(f_bf16, w_bf16, out_proj_b, block_b=16)
    out3 = jax.block_until_ready(out3)
    ref3 = f_bf16.astype(jnp.float32) @ w_bf16.astype(jnp.float32).T + out_proj_b
    assert jnp.allclose(out3, ref3, atol=1e-3, rtol=1e-3)

    # --- Test 4: realistic hidden size (H=768) in bf16, exercises the chunked
    #     reduction, bf16 sublane rounding, auto tile cap (>=2 grid steps),
    #     and a partial last batch tile ---
    B4, H4 = 48, 768
    f4 = (jax.random.normal(k_feat3, (B4, H4), dtype=jnp.float32)).astype(jnp.bfloat16)
    w4 = (jax.random.normal(k_w3, (1, H4), dtype=jnp.float32) * 0.02).astype(jnp.bfloat16)
    out4 = roberta_classification_head(f4, w4, out_proj_b)
    out4 = jax.block_until_ready(out4)
    ref4 = (jnp.sum(f4.astype(jnp.float32) * w4.astype(jnp.float32),
                    axis=-1, keepdims=True) + out_proj_b)
    assert out4.shape == (B4, 1)
    assert jnp.allclose(out4, ref4, atol=1e-3, rtol=1e-3)

    print("KERNEL_OK")
</pallas_src>

<mosaic_0001>
module attributes {stable_mosaic.version = 11 : i64} {
  func.func @_head_kernel(%arg0: i32, %arg1: memref<8x32xf32, #tpu.memory_space<vmem>>, %arg2: memref<1x32xf32, #tpu.memory_space<vmem>>, %arg3: memref<1xf32, #tpu.memory_space<smem>>, %arg4: memref<8x1xf32, #tpu.memory_space<vmem>>) attributes {dimension_semantics = [#tpu.dimension_semantics<parallel>], iteration_bounds = array<i64: 1>, scalar_prefetch = 0 : i64, scratch_operands = 0 : i64, tpu.core_type = #tpu.core_type<tc>, window_params = [{transform_indices = @transform_0, window_bounds = array<i64: 8, 32>}, {pipeline_mode = #tpu.pipeline_mode<synchronous>, transform_indices = @transform_1, window_bounds = array<i64: 1, 32>}, {transform_indices = @transform_2, window_bounds = array<i64: 1>}, {transform_indices = @transform_3, window_bounds = array<i64: 8, 1>}]} {
    %c0 = arith.constant 0 : index
    %0 = memref.load %arg3[%c0] : memref<1xf32, #tpu.memory_space<smem>>
    %c0_0 = arith.constant 0 : index
    %c0_1 = arith.constant 0 : index
    %1 = vector.load %arg1[%c0_0, %c0_1] : memref<8x32xf32, #tpu.memory_space<vmem>>, vector<8x32xf32>
    %c0_2 = arith.constant 0 : index
    %c0_3 = arith.constant 0 : index
    %2 = vector.load %arg2[%c0_2, %c0_3] : memref<1x32xf32, #tpu.memory_space<vmem>>, vector<1x32xf32>
    %3 = vector.broadcast %2 : vector<1x32xf32> to vector<8x32xf32>
    %4 = arith.mulf %1, %3 : vector<8x32xf32>
    %cst = arith.constant dense<0.000000e+00> : vector<8xf32>
    %5 = vector.multi_reduction <add>, %4, %cst [1] : vector<8x32xf32> to vector<8xf32>
    %6 = vector.shape_cast %5 : vector<8xf32> to vector<8x1xf32>
    %7 = vector.broadcast %0 : f32 to vector<8x1xf32>
    %8 = arith.addf %6, %7 : vector<8x1xf32>
    %c0_4 = arith.constant 0 : index
    %c0_5 = arith.constant 0 : index
    %9 = vector.load %arg4[%c0_4, %c0_5] : memref<8x1xf32, #tpu.memory_space<vmem>>, vector<8x1xf32>
    tpu.vector_store %arg4[%c0_4, %c0_5], %8 {strides = array<i32>} : memref<8x1xf32, #tpu.memory_space<vmem>>, vector<8x1xf32>,
    return
  }
  func.func @transform_0(%arg0: i32) -> (i32, i32) {
    %c0_i32 = arith.constant 0 : i32
    %c0_i32_0 = arith.constant 0 : i32
    return %arg0, %c0_i32 : i32, i32
  }
  func.func @transform_1(%arg0: i32) -> (i32, i32) {
    %c0_i32 = arith.constant 0 : i32
    %c0_i32_0 = arith.constant 0 : i32
    %c0_i32_1 = arith.constant 0 : i32
    return %c0_i32, %c0_i32_0 : i32, i32
  }
  func.func @transform_2(%arg0: i32) -> i32 {
    %c0_i32 = arith.constant 0 : i32
    %c0_i32_0 = arith.constant 0 : i32
    return %c0_i32 : i32
  }
  func.func @transform_3(%arg0: i32) -> (i32, i32) {
    %c0_i32 = arith.constant 0 : i32
    %c0_i32_0 = arith.constant 0 : i32
    return %arg0, %c0_i32 : i32, i32
  }
}

</mosaic_0001>

<llo_original>
// kernel: tpu_custom_call.1
$region0: #{tpu_custom_call.1}
  #allocation0 [shape = 'u32[]', space=smem, size = 0x4, offset = 0x4, fixed_abs, tag = 'smem constant byte address 0x4 - core index']
  #allocation1 [shape = 'u32[144,128]{1,0:T(1,128)}', space=vmem, size = 0x12000, scoped, tag = 'internal scratch']
  #allocation2 [shape = 'f32[1]{0:T(128)S(6)}', space=smem, size = 0x200, scoped, tag = 'scoped memory for tpu_custom_call.1']
  %s0 = inlined_call_operand.hbm [shape: f32[8,32], index: 0, kind: input, shape index: {}]
  %s1 = inlined_call_operand.vmem [shape: f32[1,32], index: 1, kind: input, shape index: {}]
  %s2 = inlined_call_operand.<no memory space> [shape: f32[1], index: 2, kind: input, shape index: {}]
  %s3 = inlined_call_operand.vmem [shape: f32[8,1], index: 3, kind: output, shape index: {}]
  %s4 = sld [smem:[#allocation0]]
  $region26: #{tpu_custom_call.1} parent=0
    _
  %s6 = ssub.s32 1, %s4
  %s7 = scalar_select 0, %s6, %s4
  %8 = sst [smem:[#allocation2]] %s2
  $region1: #{tpu_custom_call.1} parent=0
    #allocation3 [shape = 'u8[4096]{0}', space=vmem, size = 0x1000, scoped, tag = 'input window, operand 0, single buffered']
    #allocation4 [shape = 's32[1]{0}', space=sflag, size = 0x4, scoped, tag = 'scoped memory for tpu_custom_call.1']
    %9 = vsyncpa [#allocation4], 0
    // Predicated region
    $region2: #{tpu_custom_call.1} parent=1 // pred_check
      _
    $region3: #{tpu_custom_call.1} parent=1 // pred_check_branch
      %11 = sbr.rel (0) target = $region5
    $region4: #{tpu_custom_call.1} parent=1 // pred_region
      %s13 = ssub.s32 128, 128
      %14 = vsyncadd [#allocation4], %s13
      %s16 = sshll.u32 [#allocation3], 4
      %s17 = int_to_ptr.vmem [resolvable:$true] %s16
      %19 = dma.hbm_to_vmem [thread:$0]  %s0, 128, %s17, [#allocation4]
    $region5: #{tpu_custom_call.1} parent=1 // pred_fallthru
      _
    // Predicated region
    $region6: #{tpu_custom_call.1} parent=1 // pred_check
      _
    $region7: #{tpu_custom_call.1} parent=1 // pred_check_branch
      %21 = sbr.rel (0) target = $region9
    $region8: #{tpu_custom_call.1} parent=1 // pred_region
      _
    $region9: #{tpu_custom_call.1} parent=1 // pred_fallthru
      _
    // Predicated region
    $region10: #{tpu_custom_call.1} parent=1 // pred_check
      _
    $region11: #{tpu_custom_call.1} parent=1 // pred_check_branch
      %23 = sbr.rel (0) target = $region13
    $region12: #{tpu_custom_call.1} parent=1 // pred_region
      _
    $region13: #{tpu_custom_call.1} parent=1 // pred_fallthru
      _
    // Predicated region
    $region14: #{tpu_custom_call.1} parent=1 // pred_check
      _
    $region15: #{tpu_custom_call.1} parent=1 // pred_check_branch
      %25 = sbr.rel (0) target = $region17
    $region16: #{tpu_custom_call.1} parent=1 // pred_region
      %26 = dma.done [#allocation4], 128
    $region17: #{tpu_custom_call.1} parent=1 // pred_fallthru
      _
    %s27 = sld [smem:[#allocation2]]
    %v28 = vld [vmem:[#allocation3] sm:$0xff]
    %v29 = vld [vmem:[%s1] sm:$0x1]
    %v31 = vlaneseq
    %v32 = vshrl.u32 %v31, 7
    %v33 = vsub.s32 0, %v32
    %v34 = vrot.slane %v29, %v33
    %v36 = vmul.f32 %v28, %v34
    %vm37 = vcmask 261120
    %v38 = vsel %vm37, %v36, 0.0
    %39 = vadd.xlane.f32.xlu0 %v38
    %v40 = vpop.xlane.xlu0 %39
    %v41 = vstv %s27
    %v42 = vadd.f32 %v40, %v41
    %vm43 = vcmask 7168
    %44 = vst.msk [vmem:[%s3] sm:$0xff] %vm43, %v42
    // Predicated region
    $region18: #{tpu_custom_call.1} parent=1 // pred_check
      _
    $region19: #{tpu_custom_call.1} parent=1 // pred_check_branch
      %46 = sbr.rel (0) target = $region21
    $region20: #{tpu_custom_call.1} parent=1 // pred_region
      _
    $region21: #{tpu_custom_call.1} parent=1 // pred_fallthru
      _
    // Predicated region
    $region22: #{tpu_custom_call.1} parent=1 // pred_check
      _
    $region23: #{tpu_custom_call.1} parent=1 // pred_check_branch
      %48 = sbr.rel (0) target = $region25
    $region24: #{tpu_custom_call.1} parent=1 // pred_region
      _
    $region25: #{tpu_custom_call.1} parent=1 // pred_fallthru
      _
    %49 = vsyncpa [#allocation4], 1

</llo_original>
